<compile_context>
chip_gen: v5e
topology: v5e:2x2
jax: 0.10.0
libtpu: 0.0.40
codegen_flags: <defaults>
</compile_context>

<pallas_src>
import functools
import math

import numpy as np
import jax
import jax.numpy as jnp
from jax.experimental import pallas as pl
from jax.experimental.pallas import tpu as pltpu


FACTOR = 4
PAD = 3
KSIZE = 2 * PAD + 1  # 7x7 PSF, consistent with ReflectionPad2d(3) / crop(3)

# Bicubic (a = -0.75) coefficients for the constant source fraction t = 0.5 that
# F.interpolate(scale_factor=1/4, mode="bicubic", recompute_scale_factor=False)
# reduces to when H, W are divisible by the factor.
BICUBIC_TAPS = (-0.09375, 0.59375, 0.59375, -0.09375)

# Deterministic synthetic sensor MTF-at-Nyquist per band (R, G, B, NIR).
# TODO(synk): SatParamsSentinel2 / the original PD() PSF routine are not in the
# provided source; "sat_params * factor" is modeled as a per-band Gaussian PSF
# whose width scales linearly with `factor`.
SENTINEL2_MTF = (0.275, 0.285, 0.283, 0.268)
NBANDS = len(SENTINEL2_MTF)

_BF16 = jnp.bfloat16
_BAND_ALIGN = 128            # alignment of the dynamic input-row slice start
_BAND_HALO = 128             # halo rows on each side of a row tile's band
_SINGLE_BUF_BYTES = 2 << 20  # single-buffer inner-invariant blocks above this


# ----------------------------------------------------------------------------
# Host-side construction of the folded per-channel operators.
# ----------------------------------------------------------------------------
def _gauss1d(sigma: float, ksize: int) -> np.ndarray:
    half = (ksize - 1) / 2.0
    coords = np.arange(ksize, dtype=np.float64) - half
    g = np.exp(-0.5 * (coords / sigma) ** 2)
    return (g / g.sum()).astype(np.float32)


def _reflect_matrix(size: int, pad: int) -> np.ndarray:
    """(size+2*pad, size) operator equivalent to ReflectionPad along one axis."""
    m = np.zeros((size + 2 * pad, size), np.float32)
    for p in range(size + 2 * pad):
        s = p - pad
        if s < 0:
            s = -s
        elif s >= size:
            s = 2 * (size - 1) - s
        m[p, s] = 1.0
    return m


def _valid_conv_matrix(size: int, g1d: np.ndarray) -> np.ndarray:
    """(size, size+K-1) banded operator: 1-D 'valid' cross-correlation."""
    k = g1d.shape[0]
    m = np.zeros((size, size + k - 1), np.float32)
    for i in range(size):
        m[i, i:i + k] = g1d
    return m


def _bicubic_down_matrix(out_size: int, in_size: int, factor: int) -> np.ndarray:
    """(out_size, in_size) fixed-tap bicubic 1/factor decimation operator."""
    taps = np.array(BICUBIC_TAPS, np.float32)
    m = np.zeros((out_size, in_size), np.float32)
    for i in range(out_size):
        m[i, factor * i:factor * i + len(BICUBIC_TAPS)] = taps
    return m


def _band_sigma(mtf: float, factor: int) -> float:
    return factor * math.sqrt(-2.0 * math.log(mtf)) / (2.0 * math.pi)


def _folded_operators_np(h, w, ho, wo, factor):
    """Returns A (C, Ho, H) and B^T (C, W, Wo), float32."""
    rh = _reflect_matrix(h, PAD)
    rw = _reflect_matrix(w, PAD)
    sh = _bicubic_down_matrix(ho, h, factor)
    sw = _bicubic_down_matrix(wo, w, factor)
    a_list, bt_list = [], []
    for mtf in SENTINEL2_MTF:
        g = _gauss1d(_band_sigma(mtf, factor), KSIZE)
        gh = _valid_conv_matrix(h, g)          # (H, H+6)
        gw = _valid_conv_matrix(w, g)          # (W, W+6)
        a_list.append(sh @ gh @ rh)            # (Ho, H)
        bt_list.append((sw @ gw @ rw).T)       # (W, Wo)  pre-transposed
    return np.stack(a_list), np.stack(bt_list)


# ----------------------------------------------------------------------------
# Tiling / VMEM planning.
# ----------------------------------------------------------------------------
def _choose_row_tile(ho: int) -> int:
    """Output-row tile: 256 keeps the v6e/v7x 256x256 MXU full; small images
    use the full extent (always a legal block)."""
    if ho <= 256:
        return ho
    for t in (256, 128, 64, 32, 16, 8):
        if ho % t == 0:
            return t
    return 256  # non-divisible Ho: grid uses pl.cdiv, Pallas masks the tail


def _band_plan(h: int, tile_ho: int):
    """Input-row band covering one output-row tile's non-zero A columns."""
    stride = FACTOR * tile_ho
    band = stride + 2 * _BAND_HALO
    banded = (h % _BAND_ALIGN == 0) and (stride % _BAND_ALIGN == 0) and (band < h)
    if not banded:
        band = h
    return banded, band


def _vmem_estimate(c, h, w, wo, tile_ho, band, wchunk, x_bufs, bt_bufs):
    bf, f32 = 2, 4
    return (x_bufs * c * h * w * bf            # resident input plane (bf16)
            + 2 * c * tile_ho * band * bf      # banded A tile (double buffered)
            + bt_bufs * c * w * wo * bf        # column operator
            + 2 * c * tile_ho * wo * f32       # output block
            + tile_ho * wchunk * f32           # first-matmul intermediate chunk
            + 2 * tile_ho * wo * f32           # accumulator
            + c * tile_ho * wo * f32)          # channel-concat temporary


def _vmem_cap_bytes() -> int:
    """Generation-aware usable VMEM (v5e/v6e 128 MiB, v7x 64 MiB physical)."""
    try:
        cap = int(getattr(pltpu.get_tpu_info(), "vmem_capacity_bytes"))
    except Exception:
        cap = 64 << 20  # conservative: v7x physical size
    return int(cap * 0.85)


@functools.lru_cache(maxsize=8)
def _build_device_operators(h, w, ho, wo, factor, tile_ho, band, banded,
                            num_tiles):
    """Cached bf16 device operators: banded-A (T,C,tile_ho,band), B^T, k0."""
    a, bt = _folded_operators_np(h, w, ho, wo, factor)         # f32
    c = a.shape[0]
    ho_pad = num_tiles * tile_ho
    if ho_pad != ho:  # pad with zero rows; masked on the output store
        a = np.concatenate([a, np.zeros((c, ho_pad - ho, h), np.float32)], axis=1)
    k0 = np.zeros((num_tiles,), np.int32)
    a_band = np.zeros((num_tiles, c, tile_ho, band), np.float32)
    for i in range(num_tiles):
        if banded:
            s0 = FACTOR * i * tile_ho
            k = min(max(s0 - _BAND_HALO, 0), h - band)
        else:
            k = 0
        k0[i] = k
        rows = a[:, i * tile_ho:(i + 1) * tile_ho, :]
        # Safety: everything outside the extracted band must be exactly zero.
        assert float(np.max(np.abs(rows[:, :, :k]), initial=0.0)) == 0.0
        assert float(np.max(np.abs(rows[:, :, k + band:]), initial=0.0)) == 0.0
        a_band[i] = rows[:, :, k:k + band]
    return (jnp.asarray(a_band, dtype=_BF16),
            jnp.asarray(bt, dtype=_BF16),
            jnp.asarray(k0))


# ----------------------------------------------------------------------------
# Pallas kernel: two MXU matmuls per channel, banded row operator first.
# ----------------------------------------------------------------------------
def _physical_downsample_kernel(k0_ref, x_ref, a_ref, bt_ref, o_ref, *,
                                banded, band, wchunk, fold_channels):
    # k0_ref: (T,)  int32 SMEM      input-row offset of this tile's band
    # x_ref : (1, C, H, W)  bf16    resident unpadded plane for this batch item
    # a_ref : (1, C, tile_ho, band) bf16  banded row operator for this tile
    # bt_ref: (C, W, Wo)    bf16    column operator, pre-transposed
    # o_ref : (1, tile_ho, C*Wo) or (1, C, tile_ho, Wo)  f32
    c, w_full, wo = bt_ref.shape
    tile_ho = a_ref.shape[2]
    if banded:
        k0 = pl.multiple_of(k0_ref[pl.program_id(1)], _BAND_ALIGN)

    outs = []
    for ci in range(c):  # static unroll (C == 4)
        a_c = a_ref[0, ci]                               # (tile_ho, band) bf16
        acc = None
        for w0 in range(0, w_full, wchunk):              # static unroll
            w1 = min(w0 + wchunk, w_full)
            if banded:
                xs = x_ref[0, ci, pl.ds(k0, band), w0:w1]
            else:
                xs = x_ref[0, ci, :, w0:w1]
            # Row decimation first: N is lane-dense; f32 MXU accumulation.
            tmp = jnp.dot(a_c, xs, preferred_element_type=jnp.float32)
            part = jnp.dot(tmp.astype(_BF16), bt_ref[ci, w0:w1, :],
                           preferred_element_type=jnp.float32)
            acc = part if acc is None else acc + part
        outs.append(acc)                                 # (tile_ho, Wo) f32

    if fold_channels:
        # One lane-dense store instead of C sub-128-lane masked stores.
        o_ref[0] = jnp.concatenate(outs, axis=-1).astype(o_ref.dtype)
    else:
        for ci in range(c):
            o_ref[0, ci] = outs[ci].astype(o_ref.dtype)


def physical_downsampler(image: jnp.ndarray, factor: int = FACTOR) -> dict:
    """Equivalent of PhysicalDownsampler.forward for NCHW float inputs."""
    assert factor == FACTOR, "kernel is specialized for factor=4"
    n, c, h, w = image.shape
    assert c == NBANDS
    assert h % factor == 0 and w % factor == 0
    assert h > PAD and w > PAD
    ho, wo = h // factor, w // factor

    cap = _vmem_cap_bytes()
    tile_ho = _choose_row_tile(ho)
    wchunk = 512 if (w > 1024 and w % 512 == 0) else w

    # Shrink the row tile until the VMEM estimate fits the generation's budget.
    while True:
        banded, band = _band_plan(h, tile_ho)
        x_bytes = c * h * w * 2
        bt_bytes = c * w * wo * 2
        x_bufs = 1 if x_bytes > _SINGLE_BUF_BYTES else 2
        bt_bufs = 1 if bt_bytes > _SINGLE_BUF_BYTES else 2
        need = _vmem_estimate(c, h, w, wo, tile_ho, band, wchunk, x_bufs, bt_bufs)
        if need <= cap or tile_ho <= 8 or tile_ho % 16 != 0:
            break
        tile_ho //= 2

    num_tiles = pl.cdiv(ho, tile_ho)
    a_band, bt, k0 = _build_device_operators(h, w, ho, wo, factor, tile_ho,
                                             band, banded, num_tiles)

    # bf16 operands (halves HBM/DMA and VMEM); accumulation stays f32 on MXU.
    x = image.astype(_BF16)

    fold_channels = wo < 128
    if fold_channels:
        out_shape = jax.ShapeDtypeStruct((n, ho, c * wo), jnp.float32)
        out_spec = pl.BlockSpec((1, tile_ho, c * wo), lambda b, i, k0r: (b, i, 0))
    else:
        out_shape = jax.ShapeDtypeStruct((n, c, ho, wo), jnp.float32)
        out_spec = pl.BlockSpec((1, c, tile_ho, wo), lambda b, i, k0r: (b, 0, i, 0))

    def _maybe_single_buffered(shape, index_map, nbytes):
        # Inner-grid-axis-invariant operands gain nothing from double
        # buffering; single-buffer them once large (key for v7x's 64 MiB).
        if nbytes > _SINGLE_BUF_BYTES:
            return pl.BlockSpec(shape, index_map, pipeline_mode=pl.Buffered(1))
        return pl.BlockSpec(shape, index_map)

    in_specs = [
        # Full unpadded planes, all channels; resident across row tiles.
        _maybe_single_buffered((1, c, h, w), lambda b, i, k0r: (b, 0, 0, 0),
                               x_bytes),
        # Banded row operator, one block per output-row tile.
        pl.BlockSpec((1, c, tile_ho, band), lambda b, i, k0r: (i, 0, 0, 0)),
        # Column operator (pre-transposed), fully resident.
        _maybe_single_buffered((c, w, wo), lambda b, i, k0r: (0, 0, 0),
                               bt_bytes),
    ]

    kern = functools.partial(_physical_downsample_kernel, banded=banded,
                             band=band, wchunk=wchunk,
                             fold_channels=fold_channels)

    flops = 2 * n * c * num_tiles * tile_ho * (band * w + w * wo)
    bytes_accessed = (n * x_bytes
                      + n * num_tiles * c * tile_ho * band * 2
                      + bt_bytes
                      + n * c * ho * wo * 4)
    vmem_limit = int(min(max(int(need * 1.25) + (4 << 20), 32 << 20), cap))

    out = pl.pallas_call(
        kern,
        out_shape=out_shape,
        grid_spec=pltpu.PrefetchScalarGridSpec(
            num_scalar_prefetch=1,
            grid=(n, num_tiles),
            in_specs=in_specs,
            out_specs=out_spec,
        ),
        compiler_params=pltpu.CompilerParams(
            dimension_semantics=("parallel", "parallel"),
            vmem_limit_bytes=vmem_limit),
        cost_estimate=pl.CostEstimate(flops=flops, transcendentals=0,
                                      bytes_accessed=bytes_accessed),
    )(k0, x, a_band, bt)

    if fold_channels:
        out = out.reshape(n, ho, c, wo).transpose(0, 2, 1, 3)
    return {"generated": out}


# ----------------------------------------------------------------------------
# Pure-JAX reference (explicit pad + depthwise 7x7 conv + bicubic taps) to
# cross-check the folded-operator formulation and the Pallas lowering.
# ----------------------------------------------------------------------------
def _make_psf_bank(factor: int) -> jnp.ndarray:
    kernels = []
    for mtf in SENTINEL2_MTF:
        g = _gauss1d(_band_sigma(mtf, factor), KSIZE)
        k = np.outer(g, g)
        kernels.append((k / k.sum()).astype(np.float32))
    return jnp.asarray(np.stack(kernels))  # (C, 7, 7)


def _reference(image: jnp.ndarray, factor: int = FACTOR) -> jnp.ndarray:
    n, c, h, w = image.shape
    xp = jnp.pad(image.astype(jnp.float32),
                 ((0, 0), (0, 0), (PAD, PAD), (PAD, PAD)), mode="reflect")
    psf = _make_psf_bank(factor)
    blur = jax.lax.conv_general_dilated(
        xp, psf[:, None, :, :], window_strides=(1, 1), padding="VALID",
        feature_group_count=c, dimension_numbers=("NCHW", "OIHW", "NCHW"))
    ho, wo = h // factor, w // factor
    taps = jnp.array(BICUBIC_TAPS, jnp.float32)
    b = blur.reshape(n, c, ho, factor, wo, factor)
    return jnp.einsum("nchiwj,i,j->nchw", b, taps, taps)


if __name__ == "__main__":
    key = jax.random.PRNGKey(0)
    x = jax.random.normal(key, (2, 4, 16, 16), dtype=jnp.float32)

    result = physical_downsampler(x, FACTOR)["generated"]
    result = jax.block_until_ready(result)
    assert result.shape == (2, 4, 4, 4), result.shape

    ref = _reference(x, FACTOR)
    diff = jnp.abs(result - ref)
    max_err = float(jnp.max(diff))
    mean_err = float(jnp.mean(diff))
    # bf16 operands with f32 accumulation: expected max abs error ~1e-2
    # (worst-case bound ~5e-2); structural errors would be O(0.3+).
    assert max_err < 1e-1, max_err
    assert mean_err < 1e-2, mean_err

    print("KERNEL_OK")
</pallas_src>

<mosaic_0001>
module attributes {stable_mosaic.version = 11 : i64} {
  func.func @_physical_downsample_kernel(%arg0: i32, %arg1: i32, %arg2: memref<1xi32, #tpu.memory_space<smem>>, %arg3: memref<1x4x16x16xbf16, #tpu.memory_space<vmem>>, %arg4: memref<1x4x4x16xbf16, #tpu.memory_space<vmem>>, %arg5: memref<4x16x4xbf16, #tpu.memory_space<vmem>>, %arg6: memref<1x4x16xf32, #tpu.memory_space<vmem>>) attributes {dimension_semantics = [#tpu.dimension_semantics<parallel>, #tpu.dimension_semantics<parallel>], iteration_bounds = array<i64: 2, 1>, scalar_prefetch = 1 : i64, scratch_operands = 0 : i64, tpu.core_type = #tpu.core_type<tc>, window_params = [{transform_indices = @transform_0, window_bounds = array<i64: 1, 4, 16, 16>}, {transform_indices = @transform_1, window_bounds = array<i64: 1, 4, 4, 16>}, {pipeline_mode = #tpu.pipeline_mode<synchronous>, transform_indices = @transform_2, window_bounds = array<i64: 4, 16, 4>}, {transform_indices = @transform_3, window_bounds = array<i64: 1, 4, 16>}]} {
    %c0 = arith.constant 0 : index
    %c0_0 = arith.constant 0 : index
    %c0_1 = arith.constant 0 : index
    %c0_2 = arith.constant 0 : index
    %0 = vector.load %arg4[%c0, %c0_0, %c0_1, %c0_2] : memref<1x4x4x16xbf16, #tpu.memory_space<vmem>>, vector<1x1x4x16xbf16>
    %1 = vector.shape_cast %0 : vector<1x1x4x16xbf16> to vector<4x16xbf16>
    %c0_3 = arith.constant 0 : index
    %c0_4 = arith.constant 0 : index
    %c0_5 = arith.constant 0 : index
    %c0_6 = arith.constant 0 : index
    %2 = vector.load %arg3[%c0_3, %c0_4, %c0_5, %c0_6] : memref<1x4x16x16xbf16, #tpu.memory_space<vmem>>, vector<1x1x16x16xbf16>
    %3 = vector.shape_cast %2 : vector<1x1x16x16xbf16> to vector<16x16xbf16>
    %cst = arith.constant dense<0.000000e+00> : vector<4x16xf32>
    %4 = tpu.matmul %1, %3, %cst {dimension_numbers = #tpu.dot_dimension_numbers<[1], [0], [0], [1], [0, 0, 1, 1], [], []>} : vector<4x16xbf16>, vector<16x16xbf16>, vector<4x16xf32> -> vector<4x16xf32>
    %5 = arith.truncf %4 : vector<4x16xf32> to vector<4x16xbf16>
    %c0_7 = arith.constant 0 : index
    %c0_8 = arith.constant 0 : index
    %c0_9 = arith.constant 0 : index
    %6 = vector.load %arg5[%c0_7, %c0_8, %c0_9] : memref<4x16x4xbf16, #tpu.memory_space<vmem>>, vector<1x16x4xbf16>
    %7 = vector.shape_cast %6 : vector<1x16x4xbf16> to vector<16x4xbf16>
    %cst_10 = arith.constant dense<0.000000e+00> : vector<4x4xf32>
    %8 = tpu.matmul %5, %7, %cst_10 {dimension_numbers = #tpu.dot_dimension_numbers<[1], [0], [0], [1], [0, 0, 1, 1], [], []>} : vector<4x16xbf16>, vector<16x4xbf16>, vector<4x4xf32> -> vector<4x4xf32>
    %c0_11 = arith.constant 0 : index
    %c1 = arith.constant 1 : index
    %c0_12 = arith.constant 0 : index
    %c0_13 = arith.constant 0 : index
    %9 = vector.load %arg4[%c0_11, %c1, %c0_12, %c0_13] : memref<1x4x4x16xbf16, #tpu.memory_space<vmem>>, vector<1x1x4x16xbf16>
    %10 = vector.shape_cast %9 : vector<1x1x4x16xbf16> to vector<4x16xbf16>
    %c0_14 = arith.constant 0 : index
    %c1_15 = arith.constant 1 : index
    %c0_16 = arith.constant 0 : index
    %c0_17 = arith.constant 0 : index
    %11 = vector.load %arg3[%c0_14, %c1_15, %c0_16, %c0_17] : memref<1x4x16x16xbf16, #tpu.memory_space<vmem>>, vector<1x1x16x16xbf16>
    %12 = vector.shape_cast %11 : vector<1x1x16x16xbf16> to vector<16x16xbf16>
    %cst_18 = arith.constant dense<0.000000e+00> : vector<4x16xf32>
    %13 = tpu.matmul %10, %12, %cst_18 {dimension_numbers = #tpu.dot_dimension_numbers<[1], [0], [0], [1], [0, 0, 1, 1], [], []>} : vector<4x16xbf16>, vector<16x16xbf16>, vector<4x16xf32> -> vector<4x16xf32>
    %14 = arith.truncf %13 : vector<4x16xf32> to vector<4x16xbf16>
    %c1_19 = arith.constant 1 : index
    %c0_20 = arith.constant 0 : index
    %c0_21 = arith.constant 0 : index
    %15 = vector.load %arg5[%c1_19, %c0_20, %c0_21] : memref<4x16x4xbf16, #tpu.memory_space<vmem>>, vector<1x16x4xbf16>
    %16 = vector.shape_cast %15 : vector<1x16x4xbf16> to vector<16x4xbf16>
    %cst_22 = arith.constant dense<0.000000e+00> : vector<4x4xf32>
    %17 = tpu.matmul %14, %16, %cst_22 {dimension_numbers = #tpu.dot_dimension_numbers<[1], [0], [0], [1], [0, 0, 1, 1], [], []>} : vector<4x16xbf16>, vector<16x4xbf16>, vector<4x4xf32> -> vector<4x4xf32>
    %c0_23 = arith.constant 0 : index
    %c2 = arith.constant 2 : index
    %c0_24 = arith.constant 0 : index
    %c0_25 = arith.constant 0 : index
    %18 = vector.load %arg4[%c0_23, %c2, %c0_24, %c0_25] : memref<1x4x4x16xbf16, #tpu.memory_space<vmem>>, vector<1x1x4x16xbf16>
    %19 = vector.shape_cast %18 : vector<1x1x4x16xbf16> to vector<4x16xbf16>
    %c0_26 = arith.constant 0 : index
    %c2_27 = arith.constant 2 : index
    %c0_28 = arith.constant 0 : index
    %c0_29 = arith.constant 0 : index
    %20 = vector.load %arg3[%c0_26, %c2_27, %c0_28, %c0_29] : memref<1x4x16x16xbf16, #tpu.memory_space<vmem>>, vector<1x1x16x16xbf16>
    %21 = vector.shape_cast %20 : vector<1x1x16x16xbf16> to vector<16x16xbf16>
    %cst_30 = arith.constant dense<0.000000e+00> : vector<4x16xf32>
    %22 = tpu.matmul %19, %21, %cst_30 {dimension_numbers = #tpu.dot_dimension_numbers<[1], [0], [0], [1], [0, 0, 1, 1], [], []>} : vector<4x16xbf16>, vector<16x16xbf16>, vector<4x16xf32> -> vector<4x16xf32>
    %23 = arith.truncf %22 : vector<4x16xf32> to vector<4x16xbf16>
    %c2_31 = arith.constant 2 : index
    %c0_32 = arith.constant 0 : index
    %c0_33 = arith.constant 0 : index
    %24 = vector.load %arg5[%c2_31, %c0_32, %c0_33] : memref<4x16x4xbf16, #tpu.memory_space<vmem>>, vector<1x16x4xbf16>
    %25 = vector.shape_cast %24 : vector<1x16x4xbf16> to vector<16x4xbf16>
    %cst_34 = arith.constant dense<0.000000e+00> : vector<4x4xf32>
    %26 = tpu.matmul %23, %25, %cst_34 {dimension_numbers = #tpu.dot_dimension_numbers<[1], [0], [0], [1], [0, 0, 1, 1], [], []>} : vector<4x16xbf16>, vector<16x4xbf16>, vector<4x4xf32> -> vector<4x4xf32>
    %c0_35 = arith.constant 0 : index
    %c3 = arith.constant 3 : index
    %c0_36 = arith.constant 0 : index
    %c0_37 = arith.constant 0 : index
    %27 = vector.load %arg4[%c0_35, %c3, %c0_36, %c0_37] : memref<1x4x4x16xbf16, #tpu.memory_space<vmem>>, vector<1x1x4x16xbf16>
    %28 = vector.shape_cast %27 : vector<1x1x4x16xbf16> to vector<4x16xbf16>
    %c0_38 = arith.constant 0 : index
    %c3_39 = arith.constant 3 : index
    %c0_40 = arith.constant 0 : index
    %c0_41 = arith.constant 0 : index
    %29 = vector.load %arg3[%c0_38, %c3_39, %c0_40, %c0_41] : memref<1x4x16x16xbf16, #tpu.memory_space<vmem>>, vector<1x1x16x16xbf16>
    %30 = vector.shape_cast %29 : vector<1x1x16x16xbf16> to vector<16x16xbf16>
    %cst_42 = arith.constant dense<0.000000e+00> : vector<4x16xf32>
    %31 = tpu.matmul %28, %30, %cst_42 {dimension_numbers = #tpu.dot_dimension_numbers<[1], [0], [0], [1], [0, 0, 1, 1], [], []>} : vector<4x16xbf16>, vector<16x16xbf16>, vector<4x16xf32> -> vector<4x16xf32>
    %32 = arith.truncf %31 : vector<4x16xf32> to vector<4x16xbf16>
    %c3_43 = arith.constant 3 : index
    %c0_44 = arith.constant 0 : index
    %c0_45 = arith.constant 0 : index
    %33 = vector.load %arg5[%c3_43, %c0_44, %c0_45] : memref<4x16x4xbf16, #tpu.memory_space<vmem>>, vector<1x16x4xbf16>
    %34 = vector.shape_cast %33 : vector<1x16x4xbf16> to vector<16x4xbf16>
    %cst_46 = arith.constant dense<0.000000e+00> : vector<4x4xf32>
    %35 = tpu.matmul %32, %34, %cst_46 {dimension_numbers = #tpu.dot_dimension_numbers<[1], [0], [0], [1], [0, 0, 1, 1], [], []>} : vector<4x16xbf16>, vector<16x4xbf16>, vector<4x4xf32> -> vector<4x4xf32>
    %36 = tpu.concatenate %8, %17, %26, %35 in 1 : vector<4x4xf32>, vector<4x4xf32>, vector<4x4xf32>, vector<4x4xf32> -> vector<4x16xf32>
    %c0_47 = arith.constant 0 : index
    %c0_48 = arith.constant 0 : index
    %c0_49 = arith.constant 0 : index
    %37 = vector.load %arg6[%c0_47, %c0_48, %c0_49] : memref<1x4x16xf32, #tpu.memory_space<vmem>>, vector<1x4x16xf32>
    %38 = vector.shape_cast %37 : vector<1x4x16xf32> to vector<4x16xf32>
    %39 = vector.shape_cast %36 : vector<4x16xf32> to vector<1x4x16xf32>
    tpu.vector_store %arg6[%c0_47, %c0_48, %c0_49], %39 {strides = array<i32>} : memref<1x4x16xf32, #tpu.memory_space<vmem>>, vector<1x4x16xf32>,
    return
  }
  func.func @transform_0(%arg0: i32, %arg1: i32, %arg2: memref<1xi32, #tpu.memory_space<smem>>) -> (i32, i32, i32, i32) {
    %c0_i32 = arith.constant 0 : i32
    %c0_i32_0 = arith.constant 0 : i32
    %c0_i32_1 = arith.constant 0 : i32
    %c0_i32_2 = arith.constant 0 : i32
    return %arg0, %c0_i32, %c0_i32_0, %c0_i32_1 : i32, i32, i32, i32
  }
  func.func @transform_1(%arg0: i32, %arg1: i32, %arg2: memref<1xi32, #tpu.memory_space<smem>>) -> (i32, i32, i32, i32) {
    %c0_i32 = arith.constant 0 : i32
    %c0_i32_0 = arith.constant 0 : i32
    %c0_i32_1 = arith.constant 0 : i32
    %c0_i32_2 = arith.constant 0 : i32
    return %arg1, %c0_i32, %c0_i32_0, %c0_i32_1 : i32, i32, i32, i32
  }
  func.func @transform_2(%arg0: i32, %arg1: i32, %arg2: memref<1xi32, #tpu.memory_space<smem>>) -> (i32, i32, i32) {
    %c0_i32 = arith.constant 0 : i32
    %c0_i32_0 = arith.constant 0 : i32
    %c0_i32_1 = arith.constant 0 : i32
    %c0_i32_2 = arith.constant 0 : i32
    return %c0_i32, %c0_i32_0, %c0_i32_1 : i32, i32, i32
  }
  func.func @transform_3(%arg0: i32, %arg1: i32, %arg2: memref<1xi32, #tpu.memory_space<smem>>) -> (i32, i32, i32) {
    %c0_i32 = arith.constant 0 : i32
    %c0_i32_0 = arith.constant 0 : i32
    return %arg0, %arg1, %c0_i32 : i32, i32, i32
  }
}

</mosaic_0001>

<llo_original>
// kernel: tpu_custom_call.1
$region0: #{tpu_custom_call.1}
  #allocation0 [shape = 'u32[]', space=smem, size = 0x4, offset = 0x4, fixed_abs, tag = 'smem constant byte address 0x4 - core index']
  #allocation1 [shape = 'u32[72,128]{1,0:T(1,128)}', space=vmem, size = 0x9000, scoped, tag = 'internal scratch']
  #allocation2 [shape = 's32[1]{0}', space=sflag, size = 0x4, scoped, tag = 'scoped memory for tpu_custom_call.1']
  #allocation3 [shape = 's32[1]{0:T(128)S(6)}', space=smem, size = 0x200, scoped, tag = 'prefetched SMEM operand 0']
  %s0 = inlined_call_operand.<no memory space> [shape: s32[1], index: 0, kind: input, shape index: {}]
  %s1 = inlined_call_operand.hbm [shape: bf16[2,4,16,16], index: 1, kind: input, shape index: {}]
  %s2 = inlined_call_operand.vmem [shape: bf16[1,4,4,16], index: 2, kind: input, shape index: {}]
  %s3 = inlined_call_operand.vmem [shape: bf16[4,16,4], index: 3, kind: input, shape index: {}]
  %s4 = inlined_call_operand.hbm [shape: f32[2,4,16], index: 4, kind: output, shape index: {}]
  %s5 = sld [smem:[#allocation0]]
  $region49: #{tpu_custom_call.1} parent=0
    _
  %s7 = ssub.s32 1, %s5
  %s8 = scalar_select 0, %s7, %s5
  %9 = sst [smem:[#allocation3]] %s0
  $region1: #{tpu_custom_call.1} parent=0
    #allocation4 [shape = 'u8[32768]{0}', space=vmem, size = 0x8000, scoped, tag = 'input window, operand 1']
    #allocation5 [shape = 's32[2]{0}', space=sflag, size = 0x8, scoped, tag = 'scoped memory for tpu_custom_call.1']
    #allocation6 [shape = 's32[2]{0}', space=sflag, size = 0x8, scoped, tag = 'scoped memory for tpu_custom_call.1']
    #allocation7 [shape = 'u8[4096]{0}', space=vmem, size = 0x1000, scoped, tag = 'output window, operand 0']
    %10 = vsyncpa [#allocation5], 0
    %s11 = scalar_lea.sflag [#allocation5], 1
    %12 = vsyncpa %s11, 0
    %13 = vsyncpa [#allocation6], 0
    %s14 = scalar_lea.sflag [#allocation6], 1
    %15 = vsyncpa %s14, 0
    loop: start=0, step=1, limit=4
    $region2: #{tpu_custom_call.1} parent=1 // loop_pre_header
      _
    $region3: #{tpu_custom_call.1} parent=1 // loop_header
      %s17 = sphi 0, %s21
      %p18 = scmp.ge.s32.totalorder %s17, 4
      %s24 = sphi 0, %s36
      %s25 = sphi 0, %s32
      %s26 = sphi 0, %s24
      %s27 = sphi 0, %s25
      %s28 = sphi 0, %s26
      %s29 = sphi 0, %s27
      %s39 = sphi 0, %s41
      %s42 = sphi 0, %s39
      %s43 = sphi 0, %s42
      %s59 = sphi 0, %s43
      %s65 = sphi 0, %s67
      %s68 = sphi 0, %s65
      %s69 = sphi 0, %s68
      %s85 = sphi 0, %s69
      %s89 = sphi 0, %s89
      %s91 = sphi 0, %s89
      %s92 = sphi 0, %s91
      %s106 = sphi 0, %s92
      %s114 = sphi 0, %s116
      %s117 = sphi 0, %s114
      %s118 = sphi 0, %s117
      %s134 = sphi 0, %s118
    $region4: #{tpu_custom_call.1} parent=1 // loop_header_branch
      %20 = sbr.rel (%p18) target = $region8
    $region5: #{tpu_custom_call.1} parent=1 // loop_body
      %s22 = ssub.s32 %s17, 1
      %s23 = ssub.s32 %s17, 2
      %s30 = sadd.s32 1, %s25
      %p31 = scmp.ge.s32.totalorder %s30, 1
      %s32 = scalar_select %p31, 0, %s30
      %s33 = sadd.s32 1, %s24
      %s34 = scalar_select %p31, %s33, %s24
      %p35 = scmp.ge.s32.totalorder %s34, 2
      %s36 = scalar_select %p35, 0, %s34
      %s37 = ssub.s32 %s24, %s36
      %p38 = scmp.eq.s32.totalorder %s37, 0
      %s40 = sadd.s32 %s39, 1
      %s41 = scalar_select %p38, %s39, %s40
      %p44 = pneg %p38
      %p45 = scmp.eq.s32.totalorder %s17, 1
      %p46 = por %p44, %p45
      %p47 = scmp.ne.s32.totalorder %s39, %s42
      %p48 = scmp.eq.s32.totalorder %s17, 0
      %p49 = por %p47, %p48
      %p50 = scmp.ne.s32.totalorder %s39, %s42
      %p51 = scmp.eq.s32.totalorder %s22, 1
      %p52 = por %p50, %p51
      %p53 = scmp.ne.s32.totalorder %s42, %s43
      %p54 = scmp.eq.s32.totalorder %s22, 0
      %p55 = por %p53, %p54
      %p56 = scmp.ne.s32.totalorder %s42, %s43
      %p57 = scmp.eq.s32.totalorder %s23, 1
      %p58 = por %p56, %p57
      %p60 = scmp.ne.s32.totalorder %s43, %s59
      %p61 = scmp.eq.s32.totalorder %s23, 0
      %p62 = por %p60, %p61
      %s63 = ssub.s32 %s25, %s32
      %p64 = scmp.eq.s32.totalorder %s63, 0
      %s66 = sadd.s32 %s65, 1
      %s67 = scalar_select %p64, %s65, %s66
      %p70 = pneg %p64
      %p71 = scmp.eq.s32.totalorder %s17, 1
      %p72 = por %p70, %p71
      %p73 = scmp.ne.s32.totalorder %s65, %s68
      %p74 = scmp.eq.s32.totalorder %s17, 0
      %p75 = por %p73, %p74
      %p76 = scmp.ne.s32.totalorder %s65, %s68
      %p77 = scmp.eq.s32.totalorder %s22, 1
      %p78 = por %p76, %p77
      %p79 = scmp.ne.s32.totalorder %s68, %s69
      %p80 = scmp.eq.s32.totalorder %s22, 0
      %p81 = por %p79, %p80
      %p82 = scmp.ne.s32.totalorder %s68, %s69
      %p83 = scmp.eq.s32.totalorder %s23, 1
      %p84 = por %p82, %p83
      %p86 = scmp.ne.s32.totalorder %s69, %s85
      %p87 = scmp.eq.s32.totalorder %s23, 0
      %p88 = por %p86, %p87
      %s90 = sadd.s32 %s89, 1
      %p93 = scmp.eq.s32.totalorder %s17, 1
      %p94 = scmp.ne.s32.totalorder %s89, %s91
      %p95 = scmp.eq.s32.totalorder %s17, 0
      %p96 = por %p94, %p95
      %p97 = scmp.ne.s32.totalorder %s89, %s91
      %p98 = scmp.eq.s32.totalorder %s22, 1
      %p99 = por %p97, %p98
      %p100 = scmp.ne.s32.totalorder %s91, %s92
      %p101 = scmp.eq.s32.totalorder %s22, 0
      %p102 = por %p100, %p101
      %p103 = scmp.ne.s32.totalorder %s91, %s92
      %p104 = scmp.eq.s32.totalorder %s23, 1
      %p105 = por %p103, %p104
      %p107 = scmp.ne.s32.totalorder %s92, %s106
      %p108 = scmp.eq.s32.totalorder %s23, 0
      %p109 = por %p107, %p108
      %s110 = ssub.s32 %s24, %s36
      %s111 = ssub.s32 %s25, %s32
      %s112 = sor.u32 %s110, %s111
      %p113 = scmp.eq.s32.totalorder %s112, 0
      %s115 = sadd.s32 %s114, 1
      %s116 = scalar_select %p113, %s114, %s115
      %p119 = pneg %p113
      %p120 = scmp.eq.s32.totalorder %s17, 1
      %p121 = por %p119, %p120
      %p122 = scmp.ne.s32.totalorder %s114, %s117
      %p123 = scmp.eq.s32.totalorder %s17, 0
      %p124 = por %p122, %p123
      %p125 = scmp.ne.s32.totalorder %s114, %s117
      %p126 = scmp.eq.s32.totalorder %s22, 1
      %p127 = por %p125, %p126
      %p128 = scmp.ne.s32.totalorder %s117, %s118
      %p129 = scmp.eq.s32.totalorder %s22, 0
      %p130 = por %p128, %p129
      %p131 = scmp.ne.s32.totalorder %s117, %s118
      %p132 = scmp.eq.s32.totalorder %s23, 1
      %p133 = por %p131, %p132
      %p135 = scmp.ne.s32.totalorder %s118, %s134
      %p136 = scmp.eq.s32.totalorder %s23, 0
      %p137 = por %p135, %p136
      %p138 = scmp.le.s32.totalorder 1, %s17
      %p139 = scmp.lt.s32.totalorder %s17, 3
      %p140 = pnand %p138, %p139
      %p141 = pneg %p140
      // Predicated region
      $region9: #{tpu_custom_call.1} parent=5 // pred_check
        _
      $region10: #{tpu_custom_call.1} parent=5 // pred_check_branch
        %143 = sbr.rel (%p140) target = $region12
      $region11: #{tpu_custom_call.1} parent=5 // pred_region
        %s144 = ssub.s32 %s17, 1
        // Predicated region
        $region13: #{tpu_custom_call.1} parent=11 // pred_check
          %p145 = pneg %p81
        $region14: #{tpu_custom_call.1} parent=11 // pred_check_branch
          %147 = sbr.rel (%p145) target = $region16
        $region15: #{tpu_custom_call.1} parent=11 // pred_region
          %p148 = scmp.lt.s32.totalorder %s27, 0
          %s149 = scalar_select %p148, %s27, 0
          %s150 = smul.addr %s149, 4
          %s151 = smul.addr %s150, 2
          %s152 = scalar_lea.vmem %s2, %s151
        $region16: #{tpu_custom_call.1} parent=11 // pred_fallthru
          _
        // Predicated region
        $region17: #{tpu_custom_call.1} parent=11 // pred_check
          %p153 = pneg %p102
        $region18: #{tpu_custom_call.1} parent=11 // pred_check_branch
          %155 = sbr.rel (%p153) target = $region20
        $region19: #{tpu_custom_call.1} parent=11 // pred_region
          _
        $region20: #{tpu_custom_call.1} parent=11 // pred_fallthru
          _
      $region12: #{tpu_custom_call.1} parent=5 // pred_fallthru
        _
      %p156 = scmp.lt.s32.totalorder %s17, 2
      // Predicated region
      $region21: #{tpu_custom_call.1} parent=5 // pred_check
        %p157 = pneg %p156
      $region22: #{tpu_custom_call.1} parent=5 // pred_check_branch
        %159 = sbr.rel (%p157) target = $region24
      $region23: #{tpu_custom_call.1} parent=5 // pred_region
        // Predicated region
        $region25: #{tpu_custom_call.1} parent=23 // pred_check
          %p160 = pneg %p49
        $region26: #{tpu_custom_call.1} parent=23 // pred_check_branch
          %162 = sbr.rel (%p160) target = $region28
        $region27: #{tpu_custom_call.1} parent=23 // pred_region
          %s163 = sand.u32 %s39, 1
          %s164 = scalar_lea.sflag [#allocation5], %s163
          %s165 = sand.u32 %s39, 1
          %s166 = smul.addr %s165, 32
          %s167 = scalar_lea.vmem [#allocation4], %s166
          %169 = vsyncadd %s164, 0
          %s170 = smul.addr %s24, 8
          %s171 = smul.addr %s170, 4
          %s172 = scalar_lea.hbm %s1, %s171
          %s173 = sshll.u32 %s172, 4
          %s174 = int_to_ptr.hbm [resolvable:$true] %s173
          %s175 = sshll.u32 %s167, 4
          %s176 = int_to_ptr.vmem [resolvable:$true] %s175
          %181 = dma.hbm_to_vmem [thread:$0]  %s174, 512, %s176, %s164, 64, 64, 4
        $region28: #{tpu_custom_call.1} parent=23 // pred_fallthru
          _
      $region24: #{tpu_custom_call.1} parent=5 // pred_fallthru
        _
      %p182 = scmp.le.s32.totalorder 1, %s17
      %p183 = scmp.lt.s32.totalorder %s17, 3
      %p184 = pnand %p182, %p183
      %p185 = pneg %p184
      // Predicated region
      $region29: #{tpu_custom_call.1} parent=5 // pred_check
        _
      $region30: #{tpu_custom_call.1} parent=5 // pred_check_branch
        %187 = sbr.rel (%p184) target = $region32
      $region31: #{tpu_custom_call.1} parent=5 // pred_region
        %s188 = ssub.s32 %s17, 1
        %s189 = sand.u32 %s42, 1
        %s190 = scalar_lea.sflag [#allocation5], %s189
        %s191 = sand.u32 %s42, 1
        %s192 = smul.addr %s191, 32
        %s193 = scalar_lea.vmem [#allocation4], %s192
        // Predicated region
        $region33: #{tpu_custom_call.1} parent=31 // pred_check
          %p194 = pneg %p55
        $region34: #{tpu_custom_call.1} parent=31 // pred_check_branch
          %196 = sbr.rel (%p194) target = $region36
        $region35: #{tpu_custom_call.1} parent=31 // pred_region
          %198 = dma.done %s190, 512
        $region36: #{tpu_custom_call.1} parent=31 // pred_fallthru
          _
        %s199 = sand.u32 %s42, 1
        %s200 = scalar_lea.sflag [#allocation5], %s199
        %s201 = sand.u32 %s42, 1
        %s202 = smul.addr %s201, 32
        %s203 = scalar_lea.vmem [#allocation4], %s202
        %p204 = pneg %p55
        %p205 = pneg %p52
        %p206 = scmp.lt.s32.totalorder %s27, 0
        %s207 = scalar_select %p206, %s27, 0
        %s208 = smul.addr %s207, 4
        %s209 = smul.addr %s208, 2
        %s210 = scalar_lea.vmem %s2, %s209
        %p211 = pneg %p81
        %p212 = pneg %p78
        %p213 = pneg %p102
        %p214 = pneg %p99
        %p215 = pneg %p130
        %p216 = pneg %p127
        %s217 = sand.u32 %s117, 1
        %s218 = scalar_lea.sflag [#allocation6], %s217
        %s219 = sand.u32 %s117, 1
        %s220 = smul.addr %s219, 4
        %s221 = scalar_lea.vmem [#allocation7], %s220
        %p222 = scmp.lt.s32.totalorder %s27, 0
        %s223 = scalar_select %p222, %s27, 0
        %s224 = smul.addr %s223, 4
        %s225 = smul.addr %s224, 2
        %s226 = scalar_lea.vmem %s2, %s225
        %v228 = vld [vmem:[%s226] sm:$0x3]
        %v229 = vld [vmem:[%s193] sm:$0xf]
        %v230 = vld [vmem:[%s193 + $0x4] sm:$0xf]
        %v233 = vunpack.c.l.b16 %v229
        %v234 = vunpack.c.l.b16 %v230
        %v235 = vpack.c.b16 %v234, %v233
        %vm237 = vcmask 130048
        %v239 = vsel %vm237, %v228, 0
        %241 = vmatpush.bf16.msra.mxu0 0
        %242 = vmatpush.bf16.msra.mxu0 0
        %243 = vmatpush.bf16.msra.mxu0 0
        %244 = vmatpush.bf16.msra.mxu0 0
        %245 = vmatpush.bf16.msra.mxu0 0
        %246 = vmatpush.bf16.msra.mxu0 0
        %247 = vmatpush.bf16.msra.mxu0 0
        %248 = vmatpush.bf16.msra.mxu0 %v235
        %249 = vmatmul.bf16.gmra.mxu0 %v239
        %v250 = vpop.f32.mrf.mxu0
        %v251 = vadd.f32 0.0, %v250
        %v252 = vpop.f32.mrf.mxu0
        %253 = vdwg.mxu0
        %v254 = vpack.c.bf16 %v251, %v251
        %v255 = vld [vmem:[%s3] sm:$0xf]
        %v256 = vld [vmem:[%s3 + $0x4] sm:$0xf]
        %v259 = vunpack.c.l.b16 %v255
        %v260 = vunpack.c.l.b16 %v256
        %v261 = vpack.c.b16 %v260, %v259
        %v264 = vsel %vm237, %v254, 0
        %266 = vmatpush.bf16.msra.mxu0 0
        %267 = vmatpush.bf16.msra.mxu0 0
        %268 = vmatpush.bf16.msra.mxu0 0
        %269 = vmatpush.bf16.msra.mxu0 0
        %270 = vmatpush.bf16.msra.mxu0 0
        %271 = vmatpush.bf16.msra.mxu0 0
        %272 = vmatpush.bf16.msra.mxu0 0
        %273 = vmatpush.bf16.msra.mxu0 %v261
        %274 = vmatmul.bf16.gmra.mxu0 %v264
        %v275 = vpop.f32.mrf.mxu0
        %v276 = vadd.f32 0.0, %v275
        %v277 = vpop.f32.mrf.mxu0
        %278 = vdwg.mxu0
        %s279 = scalar_lea.vmem %s226, 2
        %v280 = vld [vmem:[%s279] sm:$0x3]
        %s281 = scalar_lea.vmem %s193, 8 [#allocation4]
        %v282 = vld [vmem:[%s281] sm:$0xf]
        %v283 = vld [vmem:[%s281 + $0x4] sm:$0xf]
        %v286 = vunpack.c.l.b16 %v282
        %v287 = vunpack.c.l.b16 %v283
        %v288 = vpack.c.b16 %v287, %v286
        %v291 = vsel %vm237, %v280, 0
        %293 = vmatpush.bf16.msra.mxu0 0
        %294 = vmatpush.bf16.msra.mxu0 0
        %295 = vmatpush.bf16.msra.mxu0 0
        %296 = vmatpush.bf16.msra.mxu0 0
        %297 = vmatpush.bf16.msra.mxu0 0
        %298 = vmatpush.bf16.msra.mxu0 0
        %299 = vmatpush.bf16.msra.mxu0 0
        %300 = vmatpush.bf16.msra.mxu0 %v288
        %301 = vmatmul.bf16.gmra.mxu0 %v291
        %v302 = vpop.f32.mrf.mxu0
        %v303 = vadd.f32 0.0, %v302
        %v304 = vpop.f32.mrf.mxu0
        %305 = vdwg.mxu0
        %v306 = vpack.c.bf16 %v303, %v303
        %s307 = scalar_lea.vmem %s3, 8
        %v308 = vld [vmem:[%s307] sm:$0xf]
        %v309 = vld [vmem:[%s307 + $0x4] sm:$0xf]
        %v312 = vunpack.c.l.b16 %v308
        %v313 = vunpack.c.l.b16 %v309
        %v314 = vpack.c.b16 %v313, %v312
        %v317 = vsel %vm237, %v306, 0
        %319 = vmatpush.bf16.msra.mxu0 0
        %320 = vmatpush.bf16.msra.mxu0 0
        %321 = vmatpush.bf16.msra.mxu0 0
        %322 = vmatpush.bf16.msra.mxu0 0
        %323 = vmatpush.bf16.msra.mxu0 0
        %324 = vmatpush.bf16.msra.mxu0 0
        %325 = vmatpush.bf16.msra.mxu0 0
        %326 = vmatpush.bf16.msra.mxu0 %v314
        %327 = vmatmul.bf16.gmra.mxu0 %v317
        %v328 = vpop.f32.mrf.mxu0
        %v329 = vadd.f32 0.0, %v328
        %v330 = vpop.f32.mrf.mxu0
        %331 = vdwg.mxu0
        %s332 = scalar_lea.vmem %s226, 4
        %v333 = vld [vmem:[%s332] sm:$0x3]
        %s334 = scalar_lea.vmem %s193, 16 [#allocation4]
        %v335 = vld [vmem:[%s334] sm:$0xf]
        %v336 = vld [vmem:[%s334 + $0x4] sm:$0xf]
        %v339 = vunpack.c.l.b16 %v335
        %v340 = vunpack.c.l.b16 %v336
        %v341 = vpack.c.b16 %v340, %v339
        %v344 = vsel %vm237, %v333, 0
        %346 = vmatpush.bf16.msra.mxu0 0
        %347 = vmatpush.bf16.msra.mxu0 0
        %348 = vmatpush.bf16.msra.mxu0 0
        %349 = vmatpush.bf16.msra.mxu0 0
        %350 = vmatpush.bf16.msra.mxu0 0
        %351 = vmatpush.bf16.msra.mxu0 0
        %352 = vmatpush.bf16.msra.mxu0 0
        %353 = vmatpush.bf16.msra.mxu0 %v341
        %354 = vmatmul.bf16.gmra.mxu0 %v344
        %v355 = vpop.f32.mrf.mxu0
        %v356 = vadd.f32 0.0, %v355
        %v357 = vpop.f32.mrf.mxu0
        %358 = vdwg.mxu0
        %v359 = vpack.c.bf16 %v356, %v356
        %s360 = scalar_lea.vmem %s3, 16
        %v361 = vld [vmem:[%s360] sm:$0xf]
        %v362 = vld [vmem:[%s360 + $0x4] sm:$0xf]
        %v365 = vunpack.c.l.b16 %v361
        %v366 = vunpack.c.l.b16 %v362
        %v367 = vpack.c.b16 %v366, %v365
        %v370 = vsel %vm237, %v359, 0
        %372 = vmatpush.bf16.msra.mxu0 0
        %373 = vmatpush.bf16.msra.mxu0 0
        %374 = vmatpush.bf16.msra.mxu0 0
        %375 = vmatpush.bf16.msra.mxu0 0
        %376 = vmatpush.bf16.msra.mxu0 0
        %377 = vmatpush.bf16.msra.mxu0 0
        %378 = vmatpush.bf16.msra.mxu0 0
        %379 = vmatpush.bf16.msra.mxu0 %v367
        %380 = vmatmul.bf16.gmra.mxu0 %v370
        %v381 = vpop.f32.mrf.mxu0
        %v382 = vadd.f32 0.0, %v381
        %v383 = vpop.f32.mrf.mxu0
        %384 = vdwg.mxu0
        %s385 = scalar_lea.vmem %s226, 6
        %v386 = vld [vmem:[%s385] sm:$0x3]
        %s387 = scalar_lea.vmem %s193, 24 [#allocation4]
        %v388 = vld [vmem:[%s387] sm:$0xf]
        %v389 = vld [vmem:[%s387 + $0x4] sm:$0xf]
        %v392 = vunpack.c.l.b16 %v388
        %v393 = vunpack.c.l.b16 %v389
        %v394 = vpack.c.b16 %v393, %v392
        %v397 = vsel %vm237, %v386, 0
        %399 = vmatpush.bf16.msra.mxu0 0
        %400 = vmatpush.bf16.msra.mxu0 0
        %401 = vmatpush.bf16.msra.mxu0 0
        %402 = vmatpush.bf16.msra.mxu0 0
        %403 = vmatpush.bf16.msra.mxu0 0
        %404 = vmatpush.bf16.msra.mxu0 0
        %405 = vmatpush.bf16.msra.mxu0 0
        %406 = vmatpush.bf16.msra.mxu0 %v394
        %407 = vmatmul.bf16.gmra.mxu0 %v397
        %v408 = vpop.f32.mrf.mxu0
        %v409 = vadd.f32 0.0, %v408
        %v410 = vpop.f32.mrf.mxu0
        %411 = vdwg.mxu0
        %v412 = vpack.c.bf16 %v409, %v409
        %s413 = scalar_lea.vmem %s3, 24
        %v414 = vld [vmem:[%s413] sm:$0xf]
        %v415 = vld [vmem:[%s413 + $0x4] sm:$0xf]
        %v418 = vunpack.c.l.b16 %v414
        %v419 = vunpack.c.l.b16 %v415
        %v420 = vpack.c.b16 %v419, %v418
        %v423 = vsel %vm237, %v412, 0
        %425 = vmatpush.bf16.msra.mxu0 0
        %426 = vmatpush.bf16.msra.mxu0 0
        %427 = vmatpush.bf16.msra.mxu0 0
        %428 = vmatpush.bf16.msra.mxu0 0
        %429 = vmatpush.bf16.msra.mxu0 0
        %430 = vmatpush.bf16.msra.mxu0 0
        %431 = vmatpush.bf16.msra.mxu0 0
        %432 = vmatpush.bf16.msra.mxu0 %v420
        %433 = vmatmul.bf16.gmra.mxu0 %v423
        %v434 = vpop.f32.mrf.mxu0
        %v435 = vadd.f32 0.0, %v434
        %v436 = vpop.f32.mrf.mxu0
        %437 = vdwg.mxu0
        %439 = vrot.lane.b32.xlu0 %v329, 4
        %v440 = vpop.permute.xlu0 %439
        %443 = vrot.lane.b32.xlu0 %v382, 8
        %v444 = vpop.permute.xlu0 %443
        %447 = vrot.lane.b32.xlu0 %v435, 12
        %v448 = vpop.permute.xlu0 %447
        %vm450 = vcmask 31744
        %v451 = vsel %vm450, %v276, %v440
        %vm452 = vcmask 64512
        %v453 = vsel %vm452, %v451, %v444
        %vm454 = vcmask 97280
        %v455 = vsel %vm454, %v453, %v448
        %vm456 = vcmask 125952
        %457 = vst.msk [vmem:[%s221] sm:$0xf] %vm456, %v455
        %s458 = sand.u32 %s117, 1
        %s459 = scalar_lea.sflag [#allocation6], %s458
        %s460 = sand.u32 %s117, 1
        %s461 = smul.addr %s460, 4
        %s462 = scalar_lea.vmem [#allocation7], %s461
        // Predicated region
        $region37: #{tpu_custom_call.1} parent=31 // pred_check
          %p463 = pneg %p127
        $region38: #{tpu_custom_call.1} parent=31 // pred_check_branch
          %465 = sbr.rel (%p463) target = $region40
        $region39: #{tpu_custom_call.1} parent=31 // pred_region
          %467 = vsyncadd %s459, 0
          %s468 = sadd.s32 %s27, %s26
          %s469 = smul.addr %s468, 4
          %s470 = scalar_lea.hbm %s4, %s469
          %s472 = sshll.u32 %s462, 4
          %s473 = int_to_ptr.vmem [resolvable:$true] %s472
          %s474 = sshll.u32 %s470, 4
          %s475 = int_to_ptr.hbm [resolvable:$true] %s474
          %477 = dma.vmem_to_hbm [thread:$0]  %s473, 64, %s475, %s459
        $region40: #{tpu_custom_call.1} parent=31 // pred_fallthru
          _
      $region32: #{tpu_custom_call.1} parent=5 // pred_fallthru
        _
      %p478 = scmp.le.s32.totalorder 2, %s17
      // Predicated region
      $region41: #{tpu_custom_call.1} parent=5 // pred_check
        %p479 = pneg %p478
      $region42: #{tpu_custom_call.1} parent=5 // pred_check_branch
        %481 = sbr.rel (%p479) target = $region44
      $region43: #{tpu_custom_call.1} parent=5 // pred_region
        %s482 = ssub.s32 %s17, 2
        // Predicated region
        $region45: #{tpu_custom_call.1} parent=43 // pred_check
          %p483 = pneg %p133
        $region46: #{tpu_custom_call.1} parent=43 // pred_check_branch
          %485 = sbr.rel (%p483) target = $region48
        $region47: #{tpu_custom_call.1} parent=43 // pred_region
          %s486 = sand.u32 %s118, 1
          %s487 = scalar_lea.sflag [#allocation6], %s486
          %s488 = sand.u32 %s118, 1
          %s489 = smul.addr %s488, 4
          %s490 = scalar_lea.vmem [#allocation7], %s489
          %492 = dma.done %s487, 64
        $region48: #{tpu_custom_call.1} parent=43 // pred_fallthru
          _
      $region44: #{tpu_custom_call.1} parent=5 // pred_fallthru
        _
    $region6: #{tpu_custom_call.1} parent=1 // loop_footer
      %s21 = sadd.s32 1, %s17
    $region7: #{tpu_custom_call.1} parent=1 // loop_footer_branch
      %16 = sbr.rel target = $region3
    $region8: #{tpu_custom_call.1} parent=1 // loop_exit
      _
    %493 = vsyncpa [#allocation5], 1
    %s494 = scalar_lea.sflag [#allocation5], 1
    %495 = vsyncpa %s494, 1
    %496 = vsyncpa [#allocation6], 1
    %s497 = scalar_lea.sflag [#allocation6], 1
    %498 = vsyncpa %s497, 1

</llo_original>
